<compile_context>
chip_gen: v5e
topology: v5e:2x2
jax: 0.10.0
libtpu: 0.0.40
codegen_flags: <defaults>
</compile_context>

<pallas_src>
import jax
import jax.numpy as jnp
from jax.experimental import pallas as pl
from jax.experimental.pallas import tpu as pltpu


def _round_up(x, m):
    return ((x + m - 1) // m) * m


# ---------------------------------------------------------------------------
# Kernel 1: fused QA head on one row tile (canonical MXU matmul, no transpose).
#   logits = x_tile @ W_eff + b_eff          (tile_r, 2) f32
#   start_ref, end_ref <- logits[:, 0:1], logits[:, 1:2]
# ---------------------------------------------------------------------------
def qa_head_kernel(x_ref, w_ref, b_ref, start_ref, end_ref):
    logits = jnp.dot(x_ref[...], w_ref[...],
                     preferred_element_type=jnp.float32)      # f32 accumulate
    logits = logits + b_ref[...]                              # (1, 2) f32 bias
    start_ref[...] = logits[:, 0:1]
    end_ref[...] = logits[:, 1:2]


# ---------------------------------------------------------------------------
# Kernel 2: CrossEntropyLoss(ignore_index=S) over start/end logits,
#           total_loss = (start_loss + end_loss) / 2
# ---------------------------------------------------------------------------
def ce_loss_kernel(sl_ref, el_ref, sp_ref, ep_ref, loss_ref):
    S = sl_ref.shape[1]
    ids = jax.lax.broadcasted_iota(jnp.int32, sl_ref.shape, 1)       # (B, S)

    def ce(logits, pos):
        pos = jnp.clip(pos, 0, S)                                    # clamp_(0, ignored_index)
        m = jnp.max(logits, axis=1, keepdims=True)
        lse = m + jnp.log(jnp.sum(jnp.exp(logits - m), axis=1, keepdims=True))
        picked = jnp.sum(jnp.where(ids == pos, logits, 0.0),
                         axis=1, keepdims=True)                      # (B, 1)
        valid = (pos != S).astype(jnp.float32)                       # ignore_index handling
        num = jnp.sum((lse - picked) * valid, axis=0, keepdims=True)
        den = jnp.sum(valid, axis=0, keepdims=True)
        # Guard the all-ignored batch (den == 0 -> PyTorch would yield NaN);
        # den >= 1 in every non-degenerate case so this is otherwise exact.
        return num / jnp.maximum(den, 1.0)

    s_loss = ce(sl_ref[...], sp_ref[...])
    e_loss = ce(el_ref[...], ep_ref[...])
    loss_ref[...] = 0.5 * (s_loss + e_loss)


# ---------------------------------------------------------------------------
# Tiling / VMEM budget helper
# ---------------------------------------------------------------------------
def _pick_tiling(R, H, x_itemsize, tile_rows=None, min_tiles=4):
    # Per-row VMEM cost of one grid step: double-buffered (tile_r, H) input +
    # two double-buffered (tile_r, 1) f32 outputs (lane-padded to 128).
    per_row = 2 * H * x_itemsize + 2 * 2 * 128 * 4
    try:
        vmem_cap = int(pltpu.get_tpu_info().vmem_capacity_bytes)
    except Exception:
        vmem_cap = 64 * 1024 * 1024            # conservative (v7x per-TC)
    budget = min(24 * 1024 * 1024, vmem_cap // 3)

    max_rows = max(128, (budget // per_row) // 128 * 128)
    # Keep >= min_tiles grid steps when possible so the parallel axis can be
    # sharded across TensorCores (v7x megacore).
    tile_r = min(max_rows, _round_up(pl.cdiv(R, min_tiles), 128))
    if tile_rows is not None:
        tile_r = min(tile_r, max(128, _round_up(int(tile_rows), 128)))
    if tile_r >= R:
        tile_r = R                             # single full block (always legal)

    vmem_used = (tile_r * per_row
                 + 2 * _round_up(H, 8) * 128 * x_itemsize      # (H, 2) weight bufs
                 + 2 * 8 * 128 * 4)                            # (1, 2) bias bufs
    vmem_limit = min(int(vmem_used * 1.4) + (4 << 20), int(vmem_cap * 0.75))
    vmem_limit = max(vmem_limit, 1 << 20)
    return tile_r, vmem_limit


# ---------------------------------------------------------------------------
# Wrapper (weight folding, tiling, pallas_call plumbing)
# ---------------------------------------------------------------------------
def transformer_qa_forward(sequence_output, dis_w, dis_b, qa_w, qa_b,
                           start_positions=None, end_positions=None,
                           tile_rows=None, activation_dtype=jnp.bfloat16):
    B, S, H = sequence_output.shape
    R = B * S
    x = sequence_output.reshape(R, H)
    if (activation_dtype is not None
            and jnp.dtype(x.dtype).itemsize > jnp.dtype(activation_dtype).itemsize):
        # HBM-read bound at ~2 flops/byte: halving activation bytes ~halves wall
        # clock. Accumulation and bias stay f32.
        x = x.astype(activation_dtype)

    # Algebraic fold of dis projection + concat + qa_outputs (done once, tiny).
    wq1 = qa_w[:H, :].astype(jnp.float32)                              # (H, 2)
    wq2 = qa_w[H:, :].astype(jnp.float32)                              # (200, 2)
    w_eff = wq1 + dis_w.astype(jnp.float32) @ wq2                      # (H, 2)
    b_eff = dis_b.astype(jnp.float32) @ wq2 + qa_b.astype(jnp.float32) # (2,)
    w_in = w_eff.astype(x.dtype)                                       # (H, 2)
    b_in = b_eff.reshape(1, 2).astype(jnp.float32)                     # (1, 2) f32

    bytes_per = jnp.dtype(x.dtype).itemsize
    tile_r, vmem_limit = _pick_tiling(R, H, bytes_per, tile_rows)
    grid = (pl.cdiv(R, tile_r),)        # ragged final block is bounds-masked

    cost = pl.CostEstimate(
        flops=2 * R * H * 2,
        transcendentals=0,
        bytes_accessed=R * H * bytes_per + 2 * H * bytes_per + 2 * R * 4)

    start_flat, end_flat = pl.pallas_call(
        qa_head_kernel,
        out_shape=(jax.ShapeDtypeStruct((R, 1), jnp.float32),
                   jax.ShapeDtypeStruct((R, 1), jnp.float32)),
        grid=grid,
        in_specs=[
            pl.BlockSpec((tile_r, H), lambda i: (i, 0)),   # row tile of activations
            pl.BlockSpec((H, 2), lambda i: (0, 0)),        # folded weight (resident)
            pl.BlockSpec((1, 2), lambda i: (0, 0)),        # folded bias (resident)
        ],
        out_specs=(pl.BlockSpec((tile_r, 1), lambda i: (i, 0)),
                   pl.BlockSpec((tile_r, 1), lambda i: (i, 0))),
        compiler_params=pltpu.CompilerParams(
            dimension_semantics=("parallel",),
            vmem_limit_bytes=vmem_limit),
        cost_estimate=cost,
    )(x, w_in, b_in)

    # Pure metadata reshapes (no strided gather between the two pallas_calls).
    start_logits = start_flat.reshape(B, S)
    end_logits = end_flat.reshape(B, S)

    if start_positions is None or end_positions is None:
        return start_logits, end_logits

    sp = start_positions.reshape(B, 1).astype(jnp.int32)
    ep = end_positions.reshape(B, 1).astype(jnp.int32)

    vmem = pl.BlockSpec(memory_space=pltpu.MemorySpace.VMEM)
    loss = pl.pallas_call(
        ce_loss_kernel,
        out_shape=jax.ShapeDtypeStruct((1, 1), jnp.float32),
        in_specs=[vmem] * 4,
        out_specs=vmem,
    )(start_logits, end_logits, sp, ep)

    return loss[0, 0], (start_logits, end_logits)


# ---------------------------------------------------------------------------
# Reference helpers (plain JAX) and self-test
# ---------------------------------------------------------------------------
def _ref_logits(seq_out, dis_w, dis_b, qa_w, qa_b):
    B, S, H = seq_out.shape
    x = seq_out.reshape(B * S, H)
    dis = x @ dis_w + dis_b
    logits = jnp.concatenate([x, dis], -1) @ qa_w + qa_b
    return logits[:, 0].reshape(B, S), logits[:, 1].reshape(B, S)


def _ref_ce_mean(logits, pos):     # positions all in-range here (no ignore)
    lse = jax.nn.logsumexp(logits, axis=1)
    picked = jnp.take_along_axis(logits, pos[:, None].astype(jnp.int32), axis=1)[:, 0]
    return jnp.mean(lse - picked)


if __name__ == "__main__":
    B, S, H, D_DIS, VOCAB = 2, 8, 32, 200, 50

    key = jax.random.PRNGKey(0)
    k_emb, k_ids, k_dw, k_db, k_qw, k_qb, k_sp, k_ep, k_ids2, k_sp2, k_ep2 = (
        jax.random.split(key, 11))

    # --- stand-in for the pretrained seq_encoder (TODO(synk) above) ---
    emb_table = jax.random.normal(k_emb, (VOCAB, H), dtype=jnp.float32) * 0.1
    input_ids = jax.random.randint(k_ids, (B, S), 0, VOCAB)
    sequence_output = emb_table[input_ids]                       # (B, S, H) f32

    # --- deterministic synthetic parameters ---
    dis_w = jax.random.normal(k_dw, (H, D_DIS), dtype=jnp.float32) * 0.05    # dis_model.mean1
    dis_b = jax.random.normal(k_db, (D_DIS,), dtype=jnp.float32) * 0.01
    qa_w = jax.random.normal(k_qw, (H + D_DIS, 2), dtype=jnp.float32) * 0.05  # Linear(H+200, 2)
    qa_b = jax.random.normal(k_qb, (2,), dtype=jnp.float32) * 0.01

    start_positions = jax.random.randint(k_sp, (B,), 0, S)
    end_positions = jax.random.randint(k_ep, (B,), 0, S)

    # --- Run 1: exact-precision path (f32 activations kept), with loss ---
    total_loss, (start_logits, end_logits) = transformer_qa_forward(
        sequence_output, dis_w, dis_b, qa_w, qa_b,
        start_positions=start_positions, end_positions=end_positions,
        activation_dtype=None)
    jax.block_until_ready((total_loss, start_logits, end_logits))

    ref_start, ref_end = _ref_logits(sequence_output, dis_w, dis_b, qa_w, qa_b)
    assert jnp.allclose(start_logits, ref_start, atol=1e-4, rtol=1e-4)
    assert jnp.allclose(end_logits, ref_end, atol=1e-4, rtol=1e-4)
    ref_loss = 0.5 * (_ref_ce_mean(ref_start, start_positions)
                      + _ref_ce_mean(ref_end, end_positions))
    assert jnp.allclose(total_loss, ref_loss, atol=1e-4, rtol=1e-4)
    assert start_logits.shape == (B, S) and end_logits.shape == (B, S)
    assert total_loss.shape == () and jnp.isfinite(total_loss)

    # --- Run 2: default fast path (bf16 activations), logits only ---
    s_bf16, e_bf16 = transformer_qa_forward(sequence_output, dis_w, dis_b, qa_w, qa_b)
    jax.block_until_ready((s_bf16, e_bf16))
    assert jnp.allclose(s_bf16, ref_start, atol=1e-2, rtol=1e-2)
    assert jnp.allclose(e_bf16, ref_end, atol=1e-2, rtol=1e-2)

    # --- Run 3: multi-tile ragged grid (R not a multiple of tile_r) ---
    B2, S2 = 2, 200                                             # R = 400, tile_r = 128 -> 4 blocks
    input_ids2 = jax.random.randint(k_ids2, (B2, S2), 0, VOCAB)
    seq_out2 = emb_table[input_ids2]
    sp2 = jax.random.randint(k_sp2, (B2,), 0, S2)
    ep2 = jax.random.randint(k_ep2, (B2,), 0, S2)
    loss2, (s2, e2) = transformer_qa_forward(
        seq_out2, dis_w, dis_b, qa_w, qa_b,
        start_positions=sp2, end_positions=ep2,
        tile_rows=128, activation_dtype=None)
    jax.block_until_ready((loss2, s2, e2))
    r_s2, r_e2 = _ref_logits(seq_out2, dis_w, dis_b, qa_w, qa_b)
    assert jnp.allclose(s2, r_s2, atol=1e-4, rtol=1e-4)
    assert jnp.allclose(e2, r_e2, atol=1e-4, rtol=1e-4)
    ref_loss2 = 0.5 * (_ref_ce_mean(r_s2, sp2) + _ref_ce_mean(r_e2, ep2))
    assert jnp.allclose(loss2, ref_loss2, atol=1e-4, rtol=1e-4)
    assert jnp.isfinite(loss2)

    print("KERNEL_OK")
</pallas_src>

<mosaic_0001>
module attributes {stable_mosaic.version = 11 : i64} {
  func.func @qa_head_kernel(%arg0: i32, %arg1: memref<16x32xf32, #tpu.memory_space<vmem>>, %arg2: memref<32x2xf32, #tpu.memory_space<vmem>>, %arg3: memref<1x2xf32, #tpu.memory_space<vmem>>, %arg4: memref<16x1xf32, #tpu.memory_space<vmem>>, %arg5: memref<16x1xf32, #tpu.memory_space<vmem>>) attributes {dimension_semantics = [#tpu.dimension_semantics<parallel>], iteration_bounds = array<i64: 1>, scalar_prefetch = 0 : i64, scratch_operands = 0 : i64, tpu.core_type = #tpu.core_type<tc>, window_params = [{transform_indices = @transform_0, window_bounds = array<i64: 16, 32>}, {pipeline_mode = #tpu.pipeline_mode<synchronous>, transform_indices = @transform_1, window_bounds = array<i64: 32, 2>}, {pipeline_mode = #tpu.pipeline_mode<synchronous>, transform_indices = @transform_2, window_bounds = array<i64: 1, 2>}, {transform_indices = @transform_3, window_bounds = array<i64: 16, 1>}, {transform_indices = @transform_4, window_bounds = array<i64: 16, 1>}]} {
    %c0 = arith.constant 0 : index
    %c0_0 = arith.constant 0 : index
    %0 = vector.load %arg1[%c0, %c0_0] : memref<16x32xf32, #tpu.memory_space<vmem>>, vector<16x32xf32>
    %c0_1 = arith.constant 0 : index
    %c0_2 = arith.constant 0 : index
    %1 = vector.load %arg2[%c0_1, %c0_2] : memref<32x2xf32, #tpu.memory_space<vmem>>, vector<32x2xf32>
    %cst = arith.constant dense<0.000000e+00> : vector<16x2xf32>
    %2 = tpu.matmul %0, %1, %cst {dimension_numbers = #tpu.dot_dimension_numbers<[1], [0], [0], [1], [0, 0, 1, 1], [], []>} : vector<16x32xf32>, vector<32x2xf32>, vector<16x2xf32> -> vector<16x2xf32>
    %c0_3 = arith.constant 0 : index
    %c0_4 = arith.constant 0 : index
    %3 = vector.load %arg3[%c0_3, %c0_4] : memref<1x2xf32, #tpu.memory_space<vmem>>, vector<1x2xf32>
    %4 = vector.broadcast %3 : vector<1x2xf32> to vector<16x2xf32>
    %5 = arith.addf %2, %4 : vector<16x2xf32>
    %6 = vector.extract_strided_slice %5 {offsets = [0, 0], sizes = [16, 1], strides = [1, 1]} : vector<16x2xf32> to vector<16x1xf32>
    %c0_5 = arith.constant 0 : index
    %c0_6 = arith.constant 0 : index
    %7 = vector.load %arg4[%c0_5, %c0_6] : memref<16x1xf32, #tpu.memory_space<vmem>>, vector<16x1xf32>
    tpu.vector_store %arg4[%c0_5, %c0_6], %6 {strides = array<i32>} : memref<16x1xf32, #tpu.memory_space<vmem>>, vector<16x1xf32>,
    %8 = vector.extract_strided_slice %5 {offsets = [0, 1], sizes = [16, 1], strides = [1, 1]} : vector<16x2xf32> to vector<16x1xf32>
    %c0_7 = arith.constant 0 : index
    %c0_8 = arith.constant 0 : index
    %9 = vector.load %arg5[%c0_7, %c0_8] : memref<16x1xf32, #tpu.memory_space<vmem>>, vector<16x1xf32>
    tpu.vector_store %arg5[%c0_7, %c0_8], %8 {strides = array<i32>} : memref<16x1xf32, #tpu.memory_space<vmem>>, vector<16x1xf32>,
    return
  }
  func.func @transform_0(%arg0: i32) -> (i32, i32) {
    %c0_i32 = arith.constant 0 : i32
    %c0_i32_0 = arith.constant 0 : i32
    return %arg0, %c0_i32 : i32, i32
  }
  func.func @transform_1(%arg0: i32) -> (i32, i32) {
    %c0_i32 = arith.constant 0 : i32
    %c0_i32_0 = arith.constant 0 : i32
    %c0_i32_1 = arith.constant 0 : i32
    return %c0_i32, %c0_i32_0 : i32, i32
  }
  func.func @transform_2(%arg0: i32) -> (i32, i32) {
    %c0_i32 = arith.constant 0 : i32
    %c0_i32_0 = arith.constant 0 : i32
    %c0_i32_1 = arith.constant 0 : i32
    return %c0_i32, %c0_i32_0 : i32, i32
  }
  func.func @transform_3(%arg0: i32) -> (i32, i32) {
    %c0_i32 = arith.constant 0 : i32
    %c0_i32_0 = arith.constant 0 : i32
    return %arg0, %c0_i32 : i32, i32
  }
  func.func @transform_4(%arg0: i32) -> (i32, i32) {
    %c0_i32 = arith.constant 0 : i32
    %c0_i32_0 = arith.constant 0 : i32
    return %arg0, %c0_i32 : i32, i32
  }
}

</mosaic_0001>

<llo_original>
// kernel: tpu_custom_call.1
$region0: #{tpu_custom_call.1}
  #allocation0 [shape = 'u32[]', space=smem, size = 0x4, offset = 0x4, fixed_abs, tag = 'smem constant byte address 0x4 - core index']
  #allocation1 [shape = 'u32[72,128]{1,0:T(1,128)}', space=vmem, size = 0x9000, scoped, tag = 'internal scratch']
  %s0 = inlined_call_operand.vmem [shape: f32[16,32], index: 0, kind: input, shape index: {}]
  %s1 = inlined_call_operand.vmem [shape: f32[32,2], index: 1, kind: input, shape index: {}]
  %s2 = inlined_call_operand.vmem [shape: f32[1,2], index: 2, kind: input, shape index: {}]
  %s3 = inlined_call_operand.vmem [shape: f32[16,1], index: 3, kind: output, shape index: {0}]
  %s4 = inlined_call_operand.vmem [shape: f32[16,1], index: 4, kind: output, shape index: {1}]
  %5 = xla_tuple %s3, %s4
  %s6 = sld [smem:[#allocation0]]
  $region30: #{tpu_custom_call.1} parent=0
    _
  %s8 = ssub.s32 1, %s6
  %s9 = scalar_select 0, %s8, %s6
  // Predicated region
  $region2: #{tpu_custom_call.1} parent=0 // pred_check
    _
  $region3: #{tpu_custom_call.1} parent=0 // pred_check_branch
    %11 = sbr.rel (0) target = $region5
  $region4: #{tpu_custom_call.1} parent=0 // pred_region
    _
  $region5: #{tpu_custom_call.1} parent=0 // pred_fallthru
    _
  // Predicated region
  $region6: #{tpu_custom_call.1} parent=0 // pred_check
    _
  $region7: #{tpu_custom_call.1} parent=0 // pred_check_branch
    %13 = sbr.rel (0) target = $region9
  $region8: #{tpu_custom_call.1} parent=0 // pred_region
    _
  $region9: #{tpu_custom_call.1} parent=0 // pred_fallthru
    _
  // Predicated region
  $region10: #{tpu_custom_call.1} parent=0 // pred_check
    _
  $region11: #{tpu_custom_call.1} parent=0 // pred_check_branch
    %15 = sbr.rel (0) target = $region13
  $region12: #{tpu_custom_call.1} parent=0 // pred_region
    _
  $region13: #{tpu_custom_call.1} parent=0 // pred_fallthru
    _
  %v16 = vld [vmem:[%s0] sm:$0xff]
  %v17 = vld [vmem:[%s0 + $0x8] sm:$0xff]
  %v18 = vld [vmem:[%s1] sm:$0xff]
  %v19 = vld [vmem:[%s1 + $0x8] sm:$0xff]
  %v20 = vld [vmem:[%s1 + $0x10] sm:$0xff]
  %v21 = vld [vmem:[%s1 + $0x18] sm:$0xff]
  %v22 = vld [vmem:[%s2] sm:$0x1]
  %v24 = vperm.slane %v22, 0
  %vm26 = vcmask 261120
  %v28 = vsel %vm26, %v16, 0
  %v31 = vsel %vm26, %v17, 0
  %33 = vmatpush.msra.mxu0 0.0
  %34 = vmatpush.msra.mxu0 0.0
  %35 = vmatpush.msra.mxu0 0.0
  %36 = vmatpush.msra.mxu0 0.0
  %37 = vmatpush.msra.mxu0 0.0
  %38 = vmatpush.msra.mxu0 0.0
  %39 = vmatpush.msra.mxu0 0.0
  %40 = vmatpush.msra.mxu0 0.0
  %41 = vmatpush.msra.mxu0 0.0
  %42 = vmatpush.msra.mxu0 0.0
  %43 = vmatpush.msra.mxu0 0.0
  %44 = vmatpush.msra.mxu0 0.0
  %45 = vmatpush.msra.mxu0 %v21
  %46 = vmatpush.msra.mxu0 %v20
  %47 = vmatpush.msra.mxu0 %v19
  %48 = vmatpush.msra.mxu0 %v18
  %49 = vmatmul.f32.gmra.mxu0 %v28
  %v50 = vpop.f32.mrf.mxu0
  %v51 = vadd.f32 %v24, %v50
  %52 = vmatmul.f32.gmra.mxu0 %v31
  %v53 = vpop.f32.mrf.mxu0
  %v54 = vadd.f32 %v24, %v53
  %55 = vdwg.mxu0
  %vm56 = vcmask 7168
  %57 = vst.msk [vmem:[%s3] sm:$0xff] %vm56, %v51
  %58 = vst.msk [vmem:[%s3 + $0x8] sm:$0xff] %vm56, %v54
  %61 = vrot.lane.b32.xlu0 %v51, 127
  %v62 = vpop.permute.xlu0 %61
  %63 = vrot.lane.b32.xlu0 %v54, 127
  %v64 = vpop.permute.xlu0 %63
  %67 = vst.msk [vmem:[%s4] sm:$0xff] %vm56, %v62
  %68 = vst.msk [vmem:[%s4 + $0x8] sm:$0xff] %vm56, %v64
  // Predicated region
  $region14: #{tpu_custom_call.1} parent=0 // pred_check
    _
  $region15: #{tpu_custom_call.1} parent=0 // pred_check_branch
    %70 = sbr.rel (0) target = $region17
  $region16: #{tpu_custom_call.1} parent=0 // pred_region
    _
  $region17: #{tpu_custom_call.1} parent=0 // pred_fallthru
    _
  // Predicated region
  $region18: #{tpu_custom_call.1} parent=0 // pred_check
    _
  $region19: #{tpu_custom_call.1} parent=0 // pred_check_branch
    %72 = sbr.rel (0) target = $region21
  $region20: #{tpu_custom_call.1} parent=0 // pred_region
    _
  $region21: #{tpu_custom_call.1} parent=0 // pred_fallthru
    _
  // Predicated region
  $region22: #{tpu_custom_call.1} parent=0 // pred_check
    _
  $region23: #{tpu_custom_call.1} parent=0 // pred_check_branch
    %74 = sbr.rel (0) target = $region25
  $region24: #{tpu_custom_call.1} parent=0 // pred_region
    _
  $region25: #{tpu_custom_call.1} parent=0 // pred_fallthru
    _
  // Predicated region
  $region26: #{tpu_custom_call.1} parent=0 // pred_check
    _
  $region27: #{tpu_custom_call.1} parent=0 // pred_check_branch
    %76 = sbr.rel (0) target = $region29
  $region28: #{tpu_custom_call.1} parent=0 // pred_region
    _
  $region29: #{tpu_custom_call.1} parent=0 // pred_fallthru
    _

</llo_original>
